<compile_context>
chip_gen: v7x
topology: tpu7x:2x2x1
jax: 0.10.0
libtpu: 0.0.40
codegen_flags: <defaults>
</compile_context>

<pallas_src>
import jax
import jax.numpy as jnp
from jax.experimental import pallas as pl
from jax.experimental.pallas import tpu as pltpu

INPUT_SIZE = 24
HIDDEN_SIZE = 10
OUTPUT_SIZE = 24


def _round_up(x, m):
    return (x + m - 1) // m * m


def _mlp_kernel_t(xT_ref, w1_ref, b1_ref, w2_ref, b2_ref, oT_ref):
    # Feature-major: batch on the lane axis.
    #   h   = relu(W1 @ xT + b1)   -> (hid, bb)
    #   out = W2 @ h + b2          -> (out, bb)
    h = jnp.dot(w1_ref[...], xT_ref[...], preferred_element_type=jnp.float32)
    h = jnp.maximum(h + b1_ref[...], 0.0)
    out = jnp.dot(w2_ref[...], h, preferred_element_type=jnp.float32)
    oT_ref[...] = (out + b2_ref[...]).astype(oT_ref.dtype)


def si_neural_network_t(xT, w1, b1, w2, b2, *, block_b=8192):
    """Feature-major entry point (lane-dense I/O).

    xT : (in_f, B)    f32  -- batch on the lane axis
    w1 : (hid, in_f)  f32  -- == PyTorch l1_in.weight (no transpose needed)
    b1 : (hid, 1)     f32
    w2 : (out, hid)   f32  -- == PyTorch l2.weight
    b2 : (out, 1)     f32
    returns (out, B)  f32
    """
    in_f, B = xT.shape
    hid = w1.shape[0]
    out_f = w2.shape[0]

    # Lane tile: multiple of 128, capped at block_b. Pad batch to a whole number
    # of tiles (padded columns are computed but sliced off).
    bb = _round_up(min(block_b, _round_up(B, 128)), 128)
    Bp = _round_up(B, bb)
    if Bp != B:
        xT = jnp.pad(xT, ((0, 0), (0, Bp - B)))

    grid = (Bp // bb,)
    flops = 2 * Bp * (in_f * hid + hid * out_f)
    bytes_accessed = 4 * (Bp * in_f + Bp * out_f
                          + in_f * hid + hid + hid * out_f + out_f)

    outT = pl.pallas_call(
        _mlp_kernel_t,
        out_shape=jax.ShapeDtypeStruct((out_f, Bp), jnp.float32),
        grid_spec=pltpu.PrefetchScalarGridSpec(
            num_scalar_prefetch=0,
            grid=grid,
            in_specs=[
                pl.BlockSpec((in_f, bb),   lambda i: (0, i)),  # xT tile (streamed)
                pl.BlockSpec((hid, in_f),  lambda i: (0, 0)),  # W1 (VMEM-resident)
                pl.BlockSpec((hid, 1),     lambda i: (0, 0)),  # b1
                pl.BlockSpec((out_f, hid), lambda i: (0, 0)),  # W2 (VMEM-resident)
                pl.BlockSpec((out_f, 1),   lambda i: (0, 0)),  # b2
            ],
            out_specs=pl.BlockSpec((out_f, bb), lambda i: (0, i)),
        ),
        compiler_params=pltpu.CompilerParams(
            dimension_semantics=("parallel",)),
        cost_estimate=pl.CostEstimate(
            flops=flops, transcendentals=0, bytes_accessed=bytes_accessed),
    )(xT, w1, b1, w2, b2)

    return outT[:, :B] if Bp != B else outT


def si_neural_network(x, w1, b1, w2, b2, *, block_b=8192):
    """Row-major convenience wrapper matching the PyTorch forward: (B, 24) -> (B, 24).

    For large B, prefer producing/consuming the (features, B) layout directly via
    si_neural_network_t so the transposes don't cost an extra HBM pass.
    """
    outT = si_neural_network_t(x.T, w1, b1, w2, b2, block_b=block_b)
    return outT.T


def init_params(key, input_size=INPUT_SIZE, hidden_size=HIDDEN_SIZE,
                out_size=OUTPUT_SIZE):
    """Deterministic synthetic params in PyTorch nn.Linear layout: W is (out, in)."""
    k1, k2, k3, k4 = jax.random.split(key, 4)
    bound1 = 1.0 / (input_size ** 0.5)
    bound2 = 1.0 / (hidden_size ** 0.5)
    w1 = jax.random.uniform(k1, (hidden_size, input_size), jnp.float32,
                            minval=-bound1, maxval=bound1)
    b1 = jax.random.uniform(k2, (hidden_size, 1), jnp.float32,
                            minval=-bound1, maxval=bound1)
    w2 = jax.random.uniform(k3, (out_size, hidden_size), jnp.float32,
                            minval=-bound2, maxval=bound2)
    b2 = jax.random.uniform(k4, (out_size, 1), jnp.float32,
                            minval=-bound2, maxval=bound2)
    return w1, b1, w2, b2


if __name__ == "__main__":
    key = jax.random.PRNGKey(0)
    kx, kp = jax.random.split(key)
    w1, b1, w2, b2 = init_params(kp)

    def ref_fwd(x):
        h = jnp.maximum(x @ w1.T + b1.reshape(1, -1), 0.0)
        return h @ w2.T + b2.reshape(1, -1)

    # Small batch (single lane-padded tile).
    B = 8
    x = jax.random.normal(kx, (B, INPUT_SIZE), dtype=jnp.float32)
    out = jax.block_until_ready(si_neural_network(x, w1, b1, w2, b2))
    assert out.shape == (B, OUTPUT_SIZE)
    assert jnp.allclose(out, ref_fwd(x), atol=1e-5, rtol=1e-5), "mismatch (small B)"

    # Ragged batch with a small tile -> multi-step grid (exercises the pipelined
    # streaming + padding path while staying at small shapes).
    B2 = 300
    x2 = jax.random.normal(kx, (B2, INPUT_SIZE), dtype=jnp.float32)
    out2 = jax.block_until_ready(
        si_neural_network(x2, w1, b1, w2, b2, block_b=128))
    assert out2.shape == (B2, OUTPUT_SIZE)
    assert jnp.allclose(out2, ref_fwd(x2), atol=1e-5, rtol=1e-5), "mismatch (ragged B)"

    # TODO(synk): optional bf16 streaming of x/out (f32 accumulation) would ~2x
    # HBM-bound throughput but changes numerics vs the f32 PyTorch reference.
    print("KERNEL_OK")
</pallas_src>

<mosaic_0001>
module attributes {stable_mosaic.version = 11 : i64} {
  func.func @_mlp_kernel_t(%arg0: i32, %arg1: memref<24x128xf32, #tpu.memory_space<vmem>>, %arg2: memref<10x24xf32, #tpu.memory_space<vmem>>, %arg3: memref<10x1xf32, #tpu.memory_space<vmem>>, %arg4: memref<24x10xf32, #tpu.memory_space<vmem>>, %arg5: memref<24x1xf32, #tpu.memory_space<vmem>>, %arg6: memref<24x128xf32, #tpu.memory_space<vmem>>) attributes {dimension_semantics = [#tpu.dimension_semantics<parallel>], iteration_bounds = array<i64: 1>, scalar_prefetch = 0 : i64, scratch_operands = 0 : i64, tpu.core_type = #tpu.core_type<tc>, window_params = [{transform_indices = @transform_0, window_bounds = array<i64: 24, 128>}, {pipeline_mode = #tpu.pipeline_mode<synchronous>, transform_indices = @transform_1, window_bounds = array<i64: 10, 24>}, {pipeline_mode = #tpu.pipeline_mode<synchronous>, transform_indices = @transform_2, window_bounds = array<i64: 10, 1>}, {pipeline_mode = #tpu.pipeline_mode<synchronous>, transform_indices = @transform_3, window_bounds = array<i64: 24, 10>}, {pipeline_mode = #tpu.pipeline_mode<synchronous>, transform_indices = @transform_4, window_bounds = array<i64: 24, 1>}, {transform_indices = @transform_5, window_bounds = array<i64: 24, 128>}]} {
    %c0 = arith.constant 0 : index
    %c0_0 = arith.constant 0 : index
    %0 = vector.load %arg2[%c0, %c0_0] : memref<10x24xf32, #tpu.memory_space<vmem>>, vector<10x24xf32>
    %c0_1 = arith.constant 0 : index
    %c0_2 = arith.constant 0 : index
    %1 = vector.load %arg1[%c0_1, %c0_2] : memref<24x128xf32, #tpu.memory_space<vmem>>, vector<24x128xf32>
    %cst = arith.constant dense<0.000000e+00> : vector<10x128xf32>
    %2 = tpu.matmul %0, %1, %cst {dimension_numbers = #tpu.dot_dimension_numbers<[1], [0], [0], [1], [0, 0, 1, 1], [], []>} : vector<10x24xf32>, vector<24x128xf32>, vector<10x128xf32> -> vector<10x128xf32>
    %c0_3 = arith.constant 0 : index
    %c0_4 = arith.constant 0 : index
    %3 = vector.load %arg3[%c0_3, %c0_4] : memref<10x1xf32, #tpu.memory_space<vmem>>, vector<10x1xf32>
    %4 = vector.broadcast %3 : vector<10x1xf32> to vector<10x128xf32>
    %5 = arith.addf %2, %4 : vector<10x128xf32>
    %cst_5 = arith.constant 0.000000e+00 : f32
    %6 = vector.broadcast %cst_5 : f32 to vector<10x128xf32>
    %7 = arith.maximumf %5, %6 : vector<10x128xf32>
    %c0_6 = arith.constant 0 : index
    %c0_7 = arith.constant 0 : index
    %8 = vector.load %arg4[%c0_6, %c0_7] : memref<24x10xf32, #tpu.memory_space<vmem>>, vector<24x10xf32>
    %cst_8 = arith.constant dense<0.000000e+00> : vector<24x128xf32>
    %9 = tpu.matmul %8, %7, %cst_8 {dimension_numbers = #tpu.dot_dimension_numbers<[1], [0], [0], [1], [0, 0, 1, 1], [], []>} : vector<24x10xf32>, vector<10x128xf32>, vector<24x128xf32> -> vector<24x128xf32>
    %c0_9 = arith.constant 0 : index
    %c0_10 = arith.constant 0 : index
    %10 = vector.load %arg5[%c0_9, %c0_10] : memref<24x1xf32, #tpu.memory_space<vmem>>, vector<24x1xf32>
    %11 = vector.broadcast %10 : vector<24x1xf32> to vector<24x128xf32>
    %12 = arith.addf %9, %11 : vector<24x128xf32>
    %c0_11 = arith.constant 0 : index
    %c0_12 = arith.constant 0 : index
    %13 = vector.load %arg6[%c0_11, %c0_12] : memref<24x128xf32, #tpu.memory_space<vmem>>, vector<24x128xf32>
    tpu.vector_store %arg6[%c0_11, %c0_12], %12 {strides = array<i32>} : memref<24x128xf32, #tpu.memory_space<vmem>>, vector<24x128xf32>,
    return
  }
  func.func @transform_0(%arg0: i32) -> (i32, i32) {
    %c0_i32 = arith.constant 0 : i32
    %c0_i32_0 = arith.constant 0 : i32
    return %c0_i32, %arg0 : i32, i32
  }
  func.func @transform_1(%arg0: i32) -> (i32, i32) {
    %c0_i32 = arith.constant 0 : i32
    %c0_i32_0 = arith.constant 0 : i32
    %c0_i32_1 = arith.constant 0 : i32
    return %c0_i32, %c0_i32_0 : i32, i32
  }
  func.func @transform_2(%arg0: i32) -> (i32, i32) {
    %c0_i32 = arith.constant 0 : i32
    %c0_i32_0 = arith.constant 0 : i32
    %c0_i32_1 = arith.constant 0 : i32
    return %c0_i32, %c0_i32_0 : i32, i32
  }
  func.func @transform_3(%arg0: i32) -> (i32, i32) {
    %c0_i32 = arith.constant 0 : i32
    %c0_i32_0 = arith.constant 0 : i32
    %c0_i32_1 = arith.constant 0 : i32
    return %c0_i32, %c0_i32_0 : i32, i32
  }
  func.func @transform_4(%arg0: i32) -> (i32, i32) {
    %c0_i32 = arith.constant 0 : i32
    %c0_i32_0 = arith.constant 0 : i32
    %c0_i32_1 = arith.constant 0 : i32
    return %c0_i32, %c0_i32_0 : i32, i32
  }
  func.func @transform_5(%arg0: i32) -> (i32, i32) {
    %c0_i32 = arith.constant 0 : i32
    %c0_i32_0 = arith.constant 0 : i32
    return %c0_i32, %arg0 : i32, i32
  }
}

</mosaic_0001>

<llo_original>
// kernel: tpu_custom_call.1
$region0: #{tpu_custom_call.1}
  #allocation0 [shape = 'u32[]', space=smem, size = 0x4, offset = 0x4, fixed_abs, tag = 'smem constant byte address 0x4 - core index']
  #allocation1 [shape = 'u32[144,128]{1,0:T(1,128)}', space=vmem, size = 0x12000, scoped, tag = 'internal scratch']
  %s0 = inlined_call_operand.vmem [shape: f32[24,128], index: 0, kind: input, shape index: {}]
  %s1 = inlined_call_operand.vmem [shape: f32[10,24], index: 1, kind: input, shape index: {}]
  %s2 = inlined_call_operand.vmem [shape: f32[10,1], index: 2, kind: input, shape index: {}]
  %s3 = inlined_call_operand.vmem [shape: f32[24,10], index: 3, kind: input, shape index: {}]
  %s4 = inlined_call_operand.vmem [shape: f32[24,1], index: 4, kind: input, shape index: {}]
  %s5 = inlined_call_operand.hbm [shape: f32[24,128], index: 5, kind: output, shape index: {}]
  %s6 = sld [smem:[#allocation0]]
  $region30: #{tpu_custom_call.1} parent=0
    _
  %s8 = ssub.s32 1, %s6
  %s9 = scalar_select 0, %s8, %s6
  $region1: #{tpu_custom_call.1} parent=0
    #allocation2 [shape = 'u8[12288]{0}', space=vmem, size = 0x3000, scoped, tag = 'output window, operand 0, single buffered']
    #allocation3 [shape = 's32[1]{0}', space=sflag, size = 0x4, scoped, tag = 'scoped memory for tpu_custom_call.1']
    %10 = vsyncpa [#allocation3], 0
    // Predicated region
    $region2: #{tpu_custom_call.1} parent=1 // pred_check
      _
    $region3: #{tpu_custom_call.1} parent=1 // pred_check_branch
      %12 = sbr.rel (0) target = $region5
    $region4: #{tpu_custom_call.1} parent=1 // pred_region
      _
    $region5: #{tpu_custom_call.1} parent=1 // pred_fallthru
      _
    // Predicated region
    $region6: #{tpu_custom_call.1} parent=1 // pred_check
      _
    $region7: #{tpu_custom_call.1} parent=1 // pred_check_branch
      %14 = sbr.rel (0) target = $region9
    $region8: #{tpu_custom_call.1} parent=1 // pred_region
      _
    $region9: #{tpu_custom_call.1} parent=1 // pred_fallthru
      _
    // Predicated region
    $region10: #{tpu_custom_call.1} parent=1 // pred_check
      _
    $region11: #{tpu_custom_call.1} parent=1 // pred_check_branch
      %16 = sbr.rel (0) target = $region13
    $region12: #{tpu_custom_call.1} parent=1 // pred_region
      _
    $region13: #{tpu_custom_call.1} parent=1 // pred_fallthru
      _
    // Predicated region
    $region14: #{tpu_custom_call.1} parent=1 // pred_check
      _
    $region15: #{tpu_custom_call.1} parent=1 // pred_check_branch
      %18 = sbr.rel (0) target = $region17
    $region16: #{tpu_custom_call.1} parent=1 // pred_region
      _
    $region17: #{tpu_custom_call.1} parent=1 // pred_fallthru
      _
    // Predicated region
    $region18: #{tpu_custom_call.1} parent=1 // pred_check
      _
    $region19: #{tpu_custom_call.1} parent=1 // pred_check_branch
      %20 = sbr.rel (0) target = $region21
    $region20: #{tpu_custom_call.1} parent=1 // pred_region
      _
    $region21: #{tpu_custom_call.1} parent=1 // pred_fallthru
      _
    %v21 = vld [vmem:[%s1] sm:$0xff]
    %v22 = vld [vmem:[%s1 + $0x8] sm:$0x3]
    %v23 = vld [vmem:[%s0] sm:$0xff]
    %v24 = vld [vmem:[%s0 + $0x8] sm:$0xff]
    %v25 = vld [vmem:[%s0 + $0x10] sm:$0xff]
    %v26 = vld [vmem:[%s2] sm:$0xff]
    %v27 = vld [vmem:[%s2 + $0x8] sm:$0x3]
    %29 = vset.pattern.permute.xlu0 0
    %30 = vperm.xlu0 %29, %v26
    %v31 = vpop.permute.xlu0 %30
    %34 = vset.pattern.permute.xlu0 0
    %35 = vperm.xlu0 %34, %v27
    %v36 = vpop.permute.xlu0 %35
    %vm38 = vcmask 195584
    %v40 = vsel %vm38, %v21, 0
    %v43 = vsel %vm38, %v22, 0
    %45 = vmatprep.subr.mxu0 0.0
    %46 = vmatpush1.msra.mxu0 %v23
    %47 = vmatprep.subr.mxu0 0.0
    %48 = vmatpush1.msra.mxu0 %v24
    %49 = vmatprep.subr.mxu0 0.0
    %50 = vmatpush1.msra.mxu0 %v25
    %51 = vmatprep.subr.mxu0 0.0
    %52 = vmatpush1.msra.mxu0 0.0
    %53 = vmatprep.subr.mxu0 0.0
    %54 = vmatpush1.msra.mxu0 0.0
    %55 = vmatprep.subr.mxu0 0.0
    %56 = vmatpush1.msra.mxu0 0.0
    %57 = vmatprep.subr.mxu0 0.0
    %58 = vmatpush1.msra.mxu0 0.0
    %59 = vmatprep.subr.mxu0 0.0
    %60 = vmatpush1.msra.mxu0 0.0
    %61 = vmatprep.subr.mxu0 0.0
    %62 = vmatpush1.msra.mxu0 0.0
    %63 = vmatprep.subr.mxu0 0.0
    %64 = vmatpush1.msra.mxu0 0.0
    %65 = vmatprep.subr.mxu0 0.0
    %66 = vmatpush1.msra.mxu0 0.0
    %67 = vmatprep.subr.mxu0 0.0
    %68 = vmatpush1.msra.mxu0 0.0
    %69 = vmatprep.subr.mxu0 0.0
    %70 = vmatpush1.msra.mxu0 0.0
    %71 = vmatprep.subr.mxu0 0.0
    %72 = vmatpush1.msra.mxu0 0.0
    %73 = vmatprep.subr.mxu0 0.0
    %74 = vmatpush1.msra.mxu0 0.0
    %75 = vmatprep.subr.mxu0 0.0
    %76 = vmatpush1.msra.mxu0 0.0
    %77 = vmatprep.subr.mxu0 0.0
    %78 = vmatpush1.msra.mxu0 0.0
    %79 = vmatprep.subr.mxu0 0.0
    %80 = vmatpush1.msra.mxu0 0.0
    %81 = vmatprep.subr.mxu0 0.0
    %82 = vmatpush1.msra.mxu0 0.0
    %83 = vmatprep.subr.mxu0 0.0
    %84 = vmatpush1.msra.mxu0 0.0
    %85 = vmatprep.subr.mxu0 0.0
    %86 = vmatpush1.msra.mxu0 0.0
    %87 = vmatprep.subr.mxu0 0.0
    %88 = vmatpush1.msra.mxu0 0.0
    %89 = vmatprep.subr.mxu0 0.0
    %90 = vmatpush1.msra.mxu0 0.0
    %91 = vmatprep.subr.mxu0 0.0
    %92 = vmatpush1.msra.mxu0 0.0
    %93 = vmatprep.subr.mxu0 0.0
    %94 = vmatpush1.msra.mxu0 0.0
    %95 = vmatprep.subr.mxu0 0.0
    %96 = vmatpush1.msra.mxu0 0.0
    %97 = vmatprep.subr.mxu0 0.0
    %98 = vmatpush1.msra.mxu0 0.0
    %99 = vmatprep.subr.mxu0 0.0
    %100 = vmatpush1.msra.mxu0 0.0
    %101 = vmatprep.subr.mxu0 0.0
    %102 = vmatpush1.msra.mxu0 0.0
    %103 = vmatprep.subr.mxu0 0.0
    %104 = vmatpush1.msra.mxu0 0.0
    %105 = vmatprep.subr.mxu0 0.0
    %106 = vmatpush1.msra.mxu0 0.0
    %107 = vmatprep.subr.mxu0 0.0
    %108 = vmatpush1.msra.mxu0 0.0
    %109 = vmatprep.mubr.f32.mxu0 0.0
    %110 = vmatmul.mubr.f32.gmra.mrb[0].mxu0 %v40
    %v111 = vpop.f32.mrb[0].mxu0
    %v112 = vadd.f32 %v31, %v111
    %v113 = vpop.f32.mrb[0].mxu0
    %114 = vmatprep.mubr.f32.mxu0 0.0
    %115 = vmatmul.mubr.f32.gmra.mrb[0].mxu0 %v43
    %v116 = vpop.f32.mrb[0].mxu0
    %v117 = vadd.f32 %v36, %v116
    %v118 = vpop.f32.mrb[0].mxu0
    %119 = vdwg.mxu0
    %v120 = vmax.f32 %v112, 0.0
    %v121 = vmax.f32 %v117, 0.0
    %v122 = vld [vmem:[%s3] sm:$0xff]
    %v123 = vld [vmem:[%s3 + $0x8] sm:$0xff]
    %v124 = vld [vmem:[%s3 + $0x10] sm:$0xff]
    %v125 = vld [vmem:[%s4] sm:$0xff]
    %v126 = vld [vmem:[%s4 + $0x8] sm:$0xff]
    %v127 = vld [vmem:[%s4 + $0x10] sm:$0xff]
    %129 = vset.pattern.permute.xlu0 0
    %130 = vperm.xlu0 %129, %v125
    %v131 = vpop.permute.xlu0 %130
    %134 = vset.pattern.permute.xlu0 0
    %135 = vperm.xlu0 %134, %v126
    %v136 = vpop.permute.xlu0 %135
    %139 = vset.pattern.permute.xlu0 0
    %140 = vperm.xlu0 %139, %v127
    %v141 = vpop.permute.xlu0 %140
    %vm143 = vcmask 80896
    %v145 = vsel %vm143, %v122, 0
    %v148 = vsel %vm143, %v123, 0
    %v151 = vsel %vm143, %v124, 0
    %vm153 = vcmask 1041408
    %v155 = vsel %vm153, %v121, 0
    %157 = vmatprep.subr.mxu0 0.0
    %158 = vmatpush1.msra.mxu0 %v120
    %159 = vmatprep.subr.mxu0 0.0
    %160 = vmatpush1.msra.mxu0 %v155
    %161 = vmatprep.subr.mxu0 0.0
    %162 = vmatpush1.msra.mxu0 0.0
    %163 = vmatprep.subr.mxu0 0.0
    %164 = vmatpush1.msra.mxu0 0.0
    %165 = vmatprep.subr.mxu0 0.0
    %166 = vmatpush1.msra.mxu0 0.0
    %167 = vmatprep.subr.mxu0 0.0
    %168 = vmatpush1.msra.mxu0 0.0
    %169 = vmatprep.subr.mxu0 0.0
    %170 = vmatpush1.msra.mxu0 0.0
    %171 = vmatprep.subr.mxu0 0.0
    %172 = vmatpush1.msra.mxu0 0.0
    %173 = vmatprep.subr.mxu0 0.0
    %174 = vmatpush1.msra.mxu0 0.0
    %175 = vmatprep.subr.mxu0 0.0
    %176 = vmatpush1.msra.mxu0 0.0
    %177 = vmatprep.subr.mxu0 0.0
    %178 = vmatpush1.msra.mxu0 0.0
    %179 = vmatprep.subr.mxu0 0.0
    %180 = vmatpush1.msra.mxu0 0.0
    %181 = vmatprep.subr.mxu0 0.0
    %182 = vmatpush1.msra.mxu0 0.0
    %183 = vmatprep.subr.mxu0 0.0
    %184 = vmatpush1.msra.mxu0 0.0
    %185 = vmatprep.subr.mxu0 0.0
    %186 = vmatpush1.msra.mxu0 0.0
    %187 = vmatprep.subr.mxu0 0.0
    %188 = vmatpush1.msra.mxu0 0.0
    %189 = vmatprep.subr.mxu0 0.0
    %190 = vmatpush1.msra.mxu0 0.0
    %191 = vmatprep.subr.mxu0 0.0
    %192 = vmatpush1.msra.mxu0 0.0
    %193 = vmatprep.subr.mxu0 0.0
    %194 = vmatpush1.msra.mxu0 0.0
    %195 = vmatprep.subr.mxu0 0.0
    %196 = vmatpush1.msra.mxu0 0.0
    %197 = vmatprep.subr.mxu0 0.0
    %198 = vmatpush1.msra.mxu0 0.0
    %199 = vmatprep.subr.mxu0 0.0
    %200 = vmatpush1.msra.mxu0 0.0
    %201 = vmatprep.subr.mxu0 0.0
    %202 = vmatpush1.msra.mxu0 0.0
    %203 = vmatprep.subr.mxu0 0.0
    %204 = vmatpush1.msra.mxu0 0.0
    %205 = vmatprep.subr.mxu0 0.0
    %206 = vmatpush1.msra.mxu0 0.0
    %207 = vmatprep.subr.mxu0 0.0
    %208 = vmatpush1.msra.mxu0 0.0
    %209 = vmatprep.subr.mxu0 0.0
    %210 = vmatpush1.msra.mxu0 0.0
    %211 = vmatprep.subr.mxu0 0.0
    %212 = vmatpush1.msra.mxu0 0.0
    %213 = vmatprep.subr.mxu0 0.0
    %214 = vmatpush1.msra.mxu0 0.0
    %215 = vmatprep.subr.mxu0 0.0
    %216 = vmatpush1.msra.mxu0 0.0
    %217 = vmatprep.subr.mxu0 0.0
    %218 = vmatpush1.msra.mxu0 0.0
    %219 = vmatprep.subr.mxu0 0.0
    %220 = vmatpush1.msra.mxu0 0.0
    %221 = vmatprep.mubr.f32.mxu0 0.0
    %222 = vmatmul.mubr.f32.gmra.mrb[0].mxu0 %v145
    %v223 = vpop.f32.mrb[0].mxu0
    %v224 = vadd.f32 %v131, %v223
    %v225 = vpop.f32.mrb[0].mxu0
    %226 = vmatprep.mubr.f32.mxu0 0.0
    %227 = vmatmul.mubr.f32.gmra.mrb[0].mxu0 %v148
    %v228 = vpop.f32.mrb[0].mxu0
    %v229 = vadd.f32 %v136, %v228
    %v230 = vpop.f32.mrb[0].mxu0
    %231 = vmatprep.mubr.f32.mxu0 0.0
    %232 = vmatmul.mubr.f32.gmra.mrb[0].mxu0 %v151
    %v233 = vpop.f32.mrb[0].mxu0
    %v234 = vadd.f32 %v141, %v233
    %v235 = vpop.f32.mrb[0].mxu0
    %236 = vdwg.mxu0
    %237 = vst [vmem:[#allocation2] sm:$0xff] %v224
    %238 = vst [vmem:[#allocation2 + $0x8] sm:$0xff] %v229
    %239 = vst [vmem:[#allocation2 + $0x10] sm:$0xff] %v234
    // Predicated region
    $region22: #{tpu_custom_call.1} parent=1 // pred_check
      _
    $region23: #{tpu_custom_call.1} parent=1 // pred_check_branch
      %241 = sbr.rel (0) target = $region25
    $region24: #{tpu_custom_call.1} parent=1 // pred_region
      %s243 = ssub.s32 384, 384
      %244 = vsyncadd [#allocation3], %s243
      %s245 = sshll.u32 [#allocation2], 4
      %s246 = int_to_ptr.vmem [resolvable:$true] %s245
      %251 = dma.vmem_to_hbm [thread:$0]  %s246, 384, %s5, [#allocation3], 128, 128, 8
    $region25: #{tpu_custom_call.1} parent=1 // pred_fallthru
      _
    // Predicated region
    $region26: #{tpu_custom_call.1} parent=1 // pred_check
      _
    $region27: #{tpu_custom_call.1} parent=1 // pred_check_branch
      %253 = sbr.rel (0) target = $region29
    $region28: #{tpu_custom_call.1} parent=1 // pred_region
      %254 = dma.done [#allocation3], 384
    $region29: #{tpu_custom_call.1} parent=1 // pred_fallthru
      _
    %255 = vsyncpa [#allocation3], 1

</llo_original>
